<compile_context>
chip_gen: v7x
topology: tpu7x:2x2x1
jax: 0.10.0
libtpu: 0.0.40
codegen_flags: <defaults>
</compile_context>

<pallas_src>
import functools

import jax
import jax.numpy as jnp
from jax.experimental import pallas as pl
from jax.experimental.pallas import tpu as pltpu

_LANES = 128
_SUBLANES = 8


def _round_up(x, m):
    return (x + m - 1) // m * m


def _cdiv(a, b):
    return (a + b - 1) // b


def _weight_row_offsets(E, H1, H2):
    """Sublane-aligned row offsets of each weight block inside the weight slab."""
    off_wf = 0                                        # fused [2E, E+H1] block
    off_w2 = _round_up(off_wf + 2 * E, _SUBLANES)     # [H1, H2]
    off_w3 = _round_up(off_w2 + H1, _SUBLANES)        # [H2, L] (zero-padded cols)
    rows = _round_up(off_w3 + H2, _SUBLANES)
    return off_wf, off_w2, off_w3, rows


def prepare_params(params, dtype=jnp.float32):
    """One-time repack of PyTorch-layout params into kernel-layout slabs."""
    E = params["wm"].shape[0]
    H1 = params["w1"].shape[0]
    H2 = params["w2"].shape[0]
    L = params["w3"].shape[0]
    out_w = max(_SUBLANES, _round_up(L + 1, _SUBLANES))
    assert E + H1 <= _LANES and H1 <= _LANES and H2 <= _LANES and out_w <= _LANES

    wm = params["wm"].T                                        # [E, E]
    w1_t = params["w1"].T                                      # [2E+1, H1]
    w1q = w1_t[:E]                                             # [E, H1]
    w1quad = w1_t[E]                                           # [H1]
    w1g = w1_t[E + 1:]                                         # [E, H1]
    w2 = params["w2"].T                                        # [H1, H2]
    w3 = params["w3"].T                                        # [H2, L]

    off_wf, off_w2, off_w3, rows = _weight_row_offsets(E, H1, H2)
    w_slab = jnp.zeros((rows, _LANES), jnp.float32)
    # Fused block: [q | g] @ w_fused -> cols 0:E = q@wm ; cols E:E+H1 = q@w1q + g@w1g
    w_slab = w_slab.at[off_wf:off_wf + E, 0:E].set(wm)
    w_slab = w_slab.at[off_wf:off_wf + E, E:E + H1].set(w1q)
    w_slab = w_slab.at[off_wf + E:off_wf + 2 * E, E:E + H1].set(w1g)
    w_slab = w_slab.at[off_w2:off_w2 + H1, 0:H2].set(w2)
    w_slab = w_slab.at[off_w3:off_w3 + H2, 0:L].set(w3)        # cols L:out_w stay 0

    b_slab = jnp.zeros((_SUBLANES, _LANES), jnp.float32)       # biases stay f32
    b_slab = b_slab.at[0, :E].set(params["bm"])
    b_slab = b_slab.at[1, :H1].set(w1quad)
    b_slab = b_slab.at[2, :H1].set(params["b1"])
    b_slab = b_slab.at[3, :H2].set(params["b2"])
    b_slab = b_slab.at[4, :L].set(params["b3"])                # cols L:out_w stay 0

    return {
        "w": w_slab.astype(dtype),
        "b": b_slab,
        "dims": (E, H1, H2, L, out_w),
        "dtype": dtype,
    }


def _ruber_kernel(q_ref, g_ref, r_ref, w_ref, b_ref, out_ref, *, E, H1, H2, L, OUT_W):
    off_wf, off_w2, off_w3, _ = _weight_row_offsets(E, H1, H2)

    q = q_ref[...]                                     # [TB, E]
    g = g_ref[...]                                     # [TB, E]
    r = r_ref[...]                                     # [TB, E]

    w_fused = w_ref[off_wf:off_wf + 2 * E, 0:E + H1]   # [2E, E+H1]
    w2 = w_ref[off_w2:off_w2 + H1, 0:H2]               # [H1, H2]
    w3p = w_ref[off_w3:off_w3 + H2, 0:OUT_W]           # [H2, OUT_W] (zero past L)

    bm = b_ref[0:1, 0:E]
    w1quad = b_ref[1:2, 0:H1]
    b1 = b_ref[2:3, 0:H1]
    b2 = b_ref[3:4, 0:H2]
    b3p = b_ref[4:5, 0:OUT_W]                          # zero past L

    # One MXU push computes both mq and the q/g partial of hidden1.
    qg = jnp.concatenate([q, g], axis=1)               # tiny in-VMEM concat [TB, 2E]
    big = jnp.dot(qg, w_fused, preferred_element_type=jnp.float32)  # [TB, E+H1]

    g32 = g.astype(jnp.float32)
    mq = big[:, 0:E] + bm                              # Unreferenced.matrix(query)
    quad = jnp.sum(mq * g32, axis=1, keepdims=True)    # <Mq, g>  [TB, 1]

    # hidden1 on concat([q, quad, g]) without the odd-width concat:
    # fused partial + rank-1 quad term.  Dropout = identity (eval).
    h1 = jnp.maximum(big[:, E:E + H1] + quad * w1quad + b1, 0.0)
    h1 = h1.astype(w2.dtype)
    h2 = jnp.maximum(jnp.dot(h1, w2, preferred_element_type=jnp.float32) + b2, 0.0)
    h2 = h2.astype(w3p.dtype)

    # Padded logits: columns beyond L are zero (zero weight cols + zero bias).
    logits_pad = jnp.dot(h2, w3p, preferred_element_type=jnp.float32) + b3p

    # referenced score = <reference, generated>, written into column L.
    score = jnp.sum(r.astype(jnp.float32) * g32, axis=1, keepdims=True)
    col = jax.lax.broadcasted_iota(jnp.int32, (1, OUT_W), 1)
    out_ref[...] = logits_pad + score * (col == L).astype(jnp.float32)


def _choose_tiling(B, batch_tile):
    """Batch tile that is a multiple of 8, bounds padding to a few rows, and
    yields >=2 grid steps whenever B allows (v7x megacore batch sharding)."""
    batch_tile = max(_SUBLANES, _round_up(batch_tile, _SUBLANES))
    n = max(1, _cdiv(B, batch_tile))
    if n < 2 and B > _SUBLANES:
        n = 2
    TB = _round_up(_cdiv(B, n), _SUBLANES)
    Bp = _round_up(B, TB)
    n = Bp // TB
    return TB, Bp, n


def ruber_forward(query, reference, generated, packed, *, batch_tile=1024):
    """packed: output of prepare_params (call it once, not per forward)."""
    E, H1, H2, L, OUT_W = packed["dims"]
    dtype = packed["dtype"]
    B = query.shape[0]

    TB, Bp, n_tiles = _choose_tiling(B, batch_tile)

    def prep(a):
        a = a.astype(dtype)
        if Bp != B:                      # bounded padding; only copies if needed
            a = jnp.pad(a, ((0, Bp - B), (0, 0)))
        return a

    q = prep(query)
    g = prep(generated)
    r = prep(reference)

    kernel = functools.partial(_ruber_kernel, E=E, H1=H1, H2=H2, L=L, OUT_W=OUT_W)
    act_spec = pl.BlockSpec((TB, E), lambda i: (i, 0))          # batch-tiled acts

    out = pl.pallas_call(
        kernel,
        out_shape=jax.ShapeDtypeStruct((Bp, OUT_W), jnp.float32),
        grid=(n_tiles,),
        in_specs=[
            act_spec,                                            # query
            act_spec,                                            # generated
            act_spec,                                            # reference
            pl.BlockSpec(packed["w"].shape, lambda i: (0, 0)),   # resident weights
            pl.BlockSpec(packed["b"].shape, lambda i: (0, 0)),   # resident biases
        ],
        out_specs=pl.BlockSpec((TB, OUT_W), lambda i: (i, 0)),
        compiler_params=pltpu.CompilerParams(
            dimension_semantics=("parallel",)),   # v7x: shard batch over 2 TCs
    )(q, g, r, packed["w"], packed["b"])

    logits = out[:B, :L]
    score = out[:B, L:L + 1]
    return logits, score


def init_params(key, E, H1, H2, L):
    ks = jax.random.split(key, 8)
    scale = 0.05
    return {
        "wm": scale * jax.random.normal(ks[0], (E, E), jnp.float32),
        "bm": scale * jax.random.normal(ks[1], (E,), jnp.float32),
        "w1": scale * jax.random.normal(ks[2], (H1, 2 * E + 1), jnp.float32),
        "b1": scale * jax.random.normal(ks[3], (H1,), jnp.float32),
        "w2": scale * jax.random.normal(ks[4], (H2, H1), jnp.float32),
        "b2": scale * jax.random.normal(ks[5], (H2,), jnp.float32),
        "w3": scale * jax.random.normal(ks[6], (L, H2), jnp.float32),
        "b3": scale * jax.random.normal(ks[7], (L,), jnp.float32),
    }


def ruber_reference(query, reference, generated, params):
    """Pure-JAX reference matching the PyTorch forward (eval mode)."""
    mq = query @ params["wm"].T + params["bm"]
    quad = jnp.sum(mq * generated, axis=1, keepdims=True)
    x = jnp.concatenate([query, quad, generated], axis=1)
    h1 = jax.nn.relu(x @ params["w1"].T + params["b1"])
    h2 = jax.nn.relu(h1 @ params["w2"].T + params["b2"])
    logits = h2 @ params["w3"].T + params["b3"]
    score = jnp.sum(reference * generated, axis=1, keepdims=True)
    return logits, score


if __name__ == "__main__":
    # config: embedding_dim=32, hidden1_dim=32, hidden2_dim=16, num_labels=2
    E, H1, H2, L = 32, 32, 16, 2

    key = jax.random.PRNGKey(0)
    kp, kdata = jax.random.split(key)
    params = init_params(kp, E, H1, H2, L)
    packed = prepare_params(params)          # one-time kernel-layout repack (f32)

    ok = True
    for B in (8, 20):                        # single-tile and multi-tile/padded paths
        kq, kr, kg, kdata = jax.random.split(kdata, 4)
        query = jax.random.normal(kq, (B, E), jnp.float32)
        reference = jax.random.normal(kr, (B, E), jnp.float32)
        generated = jax.random.normal(kg, (B, E), jnp.float32)

        logits, score = ruber_forward(query, reference, generated, packed)
        jax.block_until_ready((logits, score))

        ref_logits, ref_score = ruber_reference(query, reference, generated, params)
        ok &= logits.shape == (B, L) and score.shape == (B, 1)
        ok &= bool(jnp.allclose(logits, ref_logits, atol=1e-4, rtol=1e-4))
        ok &= bool(jnp.allclose(score, ref_score, atol=1e-4, rtol=1e-4))

    assert ok
    print("KERNEL_OK")
</pallas_src>

<mosaic_0001>
module attributes {stable_mosaic.version = 11 : i64} {
  func.func @_ruber_kernel(%arg0: i32, %arg1: memref<8x32xf32, #tpu.memory_space<vmem>>, %arg2: memref<8x32xf32, #tpu.memory_space<vmem>>, %arg3: memref<8x32xf32, #tpu.memory_space<vmem>>, %arg4: memref<112x128xf32, #tpu.memory_space<vmem>>, %arg5: memref<8x128xf32, #tpu.memory_space<vmem>>, %arg6: memref<8x8xf32, #tpu.memory_space<vmem>>) attributes {dimension_semantics = [#tpu.dimension_semantics<parallel>], iteration_bounds = array<i64: 1>, scalar_prefetch = 0 : i64, scratch_operands = 0 : i64, tpu.core_type = #tpu.core_type<tc>, window_params = [{transform_indices = @transform_0, window_bounds = array<i64: 8, 32>}, {transform_indices = @transform_1, window_bounds = array<i64: 8, 32>}, {transform_indices = @transform_2, window_bounds = array<i64: 8, 32>}, {pipeline_mode = #tpu.pipeline_mode<synchronous>, transform_indices = @transform_3, window_bounds = array<i64: 112, 128>}, {pipeline_mode = #tpu.pipeline_mode<synchronous>, transform_indices = @transform_4, window_bounds = array<i64: 8, 128>}, {transform_indices = @transform_5, window_bounds = array<i64: 8, 8>}]} {
    %c0 = arith.constant 0 : index
    %c0_0 = arith.constant 0 : index
    %0 = vector.load %arg1[%c0, %c0_0] : memref<8x32xf32, #tpu.memory_space<vmem>>, vector<8x32xf32>
    %c0_1 = arith.constant 0 : index
    %c0_2 = arith.constant 0 : index
    %1 = vector.load %arg2[%c0_1, %c0_2] : memref<8x32xf32, #tpu.memory_space<vmem>>, vector<8x32xf32>
    %c0_3 = arith.constant 0 : index
    %c0_4 = arith.constant 0 : index
    %2 = vector.load %arg3[%c0_3, %c0_4] : memref<8x32xf32, #tpu.memory_space<vmem>>, vector<8x32xf32>
    %c0_5 = arith.constant 0 : index
    %c0_6 = arith.constant 0 : index
    %3 = vector.load %arg4[%c0_5, %c0_6] : memref<112x128xf32, #tpu.memory_space<vmem>>, vector<64x64xf32>
    %c64 = arith.constant 64 : index
    %c0_7 = arith.constant 0 : index
    %4 = vector.load %arg4[%c64, %c0_7] : memref<112x128xf32, #tpu.memory_space<vmem>>, vector<32x16xf32>
    %c96 = arith.constant 96 : index
    %c0_8 = arith.constant 0 : index
    %5 = vector.load %arg4[%c96, %c0_8] : memref<112x128xf32, #tpu.memory_space<vmem>>, vector<16x8xf32>
    %c0_9 = arith.constant 0 : index
    %c0_10 = arith.constant 0 : index
    %6 = vector.load %arg5[%c0_9, %c0_10] : memref<8x128xf32, #tpu.memory_space<vmem>>, vector<1x32xf32>
    %c1 = arith.constant 1 : index
    %c0_11 = arith.constant 0 : index
    %7 = vector.load %arg5[%c1, %c0_11] : memref<8x128xf32, #tpu.memory_space<vmem>>, vector<1x32xf32>
    %c2 = arith.constant 2 : index
    %c0_12 = arith.constant 0 : index
    %8 = vector.load %arg5[%c2, %c0_12] : memref<8x128xf32, #tpu.memory_space<vmem>>, vector<1x32xf32>
    %c3 = arith.constant 3 : index
    %c0_13 = arith.constant 0 : index
    %9 = vector.load %arg5[%c3, %c0_13] : memref<8x128xf32, #tpu.memory_space<vmem>>, vector<1x16xf32>
    %c4 = arith.constant 4 : index
    %c0_14 = arith.constant 0 : index
    %10 = vector.load %arg5[%c4, %c0_14] : memref<8x128xf32, #tpu.memory_space<vmem>>, vector<1x8xf32>
    %11 = tpu.concatenate %0, %1 in 1 : vector<8x32xf32>, vector<8x32xf32> -> vector<8x64xf32>
    %cst = arith.constant dense<0.000000e+00> : vector<8x64xf32>
    %12 = tpu.matmul %11, %3, %cst {dimension_numbers = #tpu.dot_dimension_numbers<[1], [0], [0], [1], [0, 0, 1, 1], [], []>} : vector<8x64xf32>, vector<64x64xf32>, vector<8x64xf32> -> vector<8x64xf32>
    %13 = vector.extract_strided_slice %12 {offsets = [0, 0], sizes = [8, 32], strides = [1, 1]} : vector<8x64xf32> to vector<8x32xf32>
    %14 = vector.broadcast %6 : vector<1x32xf32> to vector<8x32xf32>
    %15 = arith.addf %13, %14 : vector<8x32xf32>
    %16 = arith.mulf %15, %1 : vector<8x32xf32>
    %cst_15 = arith.constant dense<0.000000e+00> : vector<8xf32>
    %17 = vector.multi_reduction <add>, %16, %cst_15 [1] : vector<8x32xf32> to vector<8xf32>
    %18 = vector.shape_cast %17 : vector<8xf32> to vector<8x1xf32>
    %19 = vector.extract_strided_slice %12 {offsets = [0, 32], sizes = [8, 32], strides = [1, 1]} : vector<8x64xf32> to vector<8x32xf32>
    %20 = vector.broadcast %18 : vector<8x1xf32> to vector<8x32xf32>
    %21 = vector.broadcast %7 : vector<1x32xf32> to vector<8x32xf32>
    %22 = arith.mulf %20, %21 : vector<8x32xf32>
    %23 = arith.addf %19, %22 : vector<8x32xf32>
    %24 = vector.broadcast %8 : vector<1x32xf32> to vector<8x32xf32>
    %25 = arith.addf %23, %24 : vector<8x32xf32>
    %cst_16 = arith.constant 0.000000e+00 : f32
    %26 = vector.broadcast %cst_16 : f32 to vector<8x32xf32>
    %27 = arith.maximumf %25, %26 : vector<8x32xf32>
    %cst_17 = arith.constant dense<0.000000e+00> : vector<8x16xf32>
    %28 = tpu.matmul %27, %4, %cst_17 {dimension_numbers = #tpu.dot_dimension_numbers<[1], [0], [0], [1], [0, 0, 1, 1], [], []>} : vector<8x32xf32>, vector<32x16xf32>, vector<8x16xf32> -> vector<8x16xf32>
    %29 = vector.broadcast %9 : vector<1x16xf32> to vector<8x16xf32>
    %30 = arith.addf %28, %29 : vector<8x16xf32>
    %cst_18 = arith.constant 0.000000e+00 : f32
    %31 = vector.broadcast %cst_18 : f32 to vector<8x16xf32>
    %32 = arith.maximumf %30, %31 : vector<8x16xf32>
    %cst_19 = arith.constant dense<0.000000e+00> : vector<8x8xf32>
    %33 = tpu.matmul %32, %5, %cst_19 {dimension_numbers = #tpu.dot_dimension_numbers<[1], [0], [0], [1], [0, 0, 1, 1], [], []>} : vector<8x16xf32>, vector<16x8xf32>, vector<8x8xf32> -> vector<8x8xf32>
    %34 = vector.broadcast %10 : vector<1x8xf32> to vector<8x8xf32>
    %35 = arith.addf %33, %34 : vector<8x8xf32>
    %36 = arith.mulf %2, %1 : vector<8x32xf32>
    %cst_20 = arith.constant dense<0.000000e+00> : vector<8xf32>
    %37 = vector.multi_reduction <add>, %36, %cst_20 [1] : vector<8x32xf32> to vector<8xf32>
    %38 = vector.shape_cast %37 : vector<8xf32> to vector<8x1xf32>
    %39 = tpu.iota {dimensions = array<i32: 1>} : vector<1x8xi32>
    %c2_i32 = arith.constant 2 : i32
    %40 = vector.broadcast %c2_i32 : i32 to vector<1x8xi32>
    %41 = arith.cmpi eq, %39, %40 : vector<1x8xi32>
    %42 = arith.extui %41 : vector<1x8xi1> to vector<1x8xi32>
    %43 = arith.sitofp %42 : vector<1x8xi32> to vector<1x8xf32>
    %44 = vector.broadcast %38 : vector<8x1xf32> to vector<8x8xf32>
    %45 = vector.broadcast %43 : vector<1x8xf32> to vector<8x8xf32>
    %46 = arith.mulf %44, %45 : vector<8x8xf32>
    %47 = arith.addf %35, %46 : vector<8x8xf32>
    %c0_21 = arith.constant 0 : index
    %c0_22 = arith.constant 0 : index
    %48 = vector.load %arg6[%c0_21, %c0_22] : memref<8x8xf32, #tpu.memory_space<vmem>>, vector<8x8xf32>
    tpu.vector_store %arg6[%c0_21, %c0_22], %47 {strides = array<i32>} : memref<8x8xf32, #tpu.memory_space<vmem>>, vector<8x8xf32>,
    return
  }
  func.func @transform_0(%arg0: i32) -> (i32, i32) {
    %c0_i32 = arith.constant 0 : i32
    %c0_i32_0 = arith.constant 0 : i32
    return %arg0, %c0_i32 : i32, i32
  }
  func.func @transform_1(%arg0: i32) -> (i32, i32) {
    %c0_i32 = arith.constant 0 : i32
    %c0_i32_0 = arith.constant 0 : i32
    return %arg0, %c0_i32 : i32, i32
  }
  func.func @transform_2(%arg0: i32) -> (i32, i32) {
    %c0_i32 = arith.constant 0 : i32
    %c0_i32_0 = arith.constant 0 : i32
    return %arg0, %c0_i32 : i32, i32
  }
  func.func @transform_3(%arg0: i32) -> (i32, i32) {
    %c0_i32 = arith.constant 0 : i32
    %c0_i32_0 = arith.constant 0 : i32
    %c0_i32_1 = arith.constant 0 : i32
    return %c0_i32, %c0_i32_0 : i32, i32
  }
  func.func @transform_4(%arg0: i32) -> (i32, i32) {
    %c0_i32 = arith.constant 0 : i32
    %c0_i32_0 = arith.constant 0 : i32
    %c0_i32_1 = arith.constant 0 : i32
    return %c0_i32, %c0_i32_0 : i32, i32
  }
  func.func @transform_5(%arg0: i32) -> (i32, i32) {
    %c0_i32 = arith.constant 0 : i32
    %c0_i32_0 = arith.constant 0 : i32
    return %arg0, %c0_i32 : i32, i32
  }
}

</mosaic_0001>

<llo_original>
// kernel: tpu_custom_call.1
$region0: #{tpu_custom_call.1}
  #allocation0 [shape = 'u32[]', space=smem, size = 0x4, offset = 0x4, fixed_abs, tag = 'smem constant byte address 0x4 - core index']
  #allocation1 [shape = 'u32[144,128]{1,0:T(1,128)}', space=vmem, size = 0x12000, scoped, tag = 'internal scratch']
  %s0 = inlined_call_operand.hbm [shape: f32[8,32], index: 0, kind: input, shape index: {}]
  %s1 = inlined_call_operand.hbm [shape: f32[8,32], index: 1, kind: input, shape index: {}]
  %s2 = inlined_call_operand.hbm [shape: f32[8,32], index: 2, kind: input, shape index: {}]
  %s3 = inlined_call_operand.hbm [shape: f32[112,128], index: 3, kind: input, shape index: {}]
  %s4 = inlined_call_operand.vmem [shape: f32[8,128], index: 4, kind: input, shape index: {}]
  %s5 = inlined_call_operand.hbm [shape: f32[8,8], index: 5, kind: output, shape index: {}]
  %s6 = sld [smem:[#allocation0]]
  $region46: #{tpu_custom_call.1} parent=0
    _
  %s8 = ssub.s32 1, %s6
  %s9 = scalar_select 0, %s8, %s6
  $region1: #{tpu_custom_call.1} parent=0
    #allocation2 [shape = 'u8[4096]{0}', space=vmem, size = 0x1000, scoped, tag = 'input window, operand 0, single buffered']
    #allocation3 [shape = 's32[1]{0}', space=sflag, size = 0x4, scoped, tag = 'scoped memory for tpu_custom_call.1']
    #allocation4 [shape = 's32[1]{0}', space=sflag, size = 0x4, scoped, tag = 'scoped memory for tpu_custom_call.1']
    #allocation5 [shape = 'u8[4096]{0}', space=vmem, size = 0x1000, scoped, tag = 'input window, operand 1, single buffered']
    #allocation6 [shape = 's32[1]{0}', space=sflag, size = 0x4, scoped, tag = 'scoped memory for tpu_custom_call.1']
    #allocation7 [shape = 'u8[4096]{0}', space=vmem, size = 0x1000, scoped, tag = 'input window, operand 2, single buffered']
    #allocation8 [shape = 'u8[57344]{0}', space=vmem, size = 0xe000, scoped, tag = 'input window, operand 3, single buffered']
    #allocation9 [shape = 's32[1]{0}', space=sflag, size = 0x4, scoped, tag = 'scoped memory for tpu_custom_call.1']
    #allocation10 [shape = 'u8[4096]{0}', space=vmem, size = 0x1000, scoped, tag = 'output window, operand 0, single buffered']
    %10 = vsyncpa [#allocation3], 0
    %11 = vsyncpa [#allocation6], 0
    %12 = vsyncpa [#allocation9], 0
    %13 = vsyncpa [#allocation4], 0
    // Predicated region
    $region2: #{tpu_custom_call.1} parent=1 // pred_check
      _
    $region3: #{tpu_custom_call.1} parent=1 // pred_check_branch
      %15 = sbr.rel (0) target = $region5
    $region4: #{tpu_custom_call.1} parent=1 // pred_region
      %s17 = ssub.s32 128, 128
      %18 = vsyncadd [#allocation3], %s17
      %s20 = sshll.u32 [#allocation2], 4
      %s21 = int_to_ptr.vmem [resolvable:$true] %s20
      %23 = dma.hbm_to_vmem [thread:$0]  %s0, 128, %s21, [#allocation3]
    $region5: #{tpu_custom_call.1} parent=1 // pred_fallthru
      _
    // Predicated region
    $region6: #{tpu_custom_call.1} parent=1 // pred_check
      _
    $region7: #{tpu_custom_call.1} parent=1 // pred_check_branch
      %25 = sbr.rel (0) target = $region9
    $region8: #{tpu_custom_call.1} parent=1 // pred_region
      %s27 = ssub.s32 128, 128
      %28 = vsyncadd [#allocation6], %s27
      %s30 = sshll.u32 [#allocation5], 4
      %s31 = int_to_ptr.vmem [resolvable:$true] %s30
      %33 = dma.hbm_to_vmem [thread:$0]  %s1, 128, %s31, [#allocation6]
    $region9: #{tpu_custom_call.1} parent=1 // pred_fallthru
      _
    // Predicated region
    $region10: #{tpu_custom_call.1} parent=1 // pred_check
      _
    $region11: #{tpu_custom_call.1} parent=1 // pred_check_branch
      %35 = sbr.rel (0) target = $region13
    $region12: #{tpu_custom_call.1} parent=1 // pred_region
      %s37 = ssub.s32 128, 128
      %38 = vsyncadd [#allocation6], %s37
      %s40 = sshll.u32 [#allocation7], 4
      %s41 = int_to_ptr.vmem [resolvable:$true] %s40
      %43 = dma.hbm_to_vmem [thread:$0]  %s2, 128, %s41, [#allocation6]
    $region13: #{tpu_custom_call.1} parent=1 // pred_fallthru
      _
    // Predicated region
    $region14: #{tpu_custom_call.1} parent=1 // pred_check
      _
    $region15: #{tpu_custom_call.1} parent=1 // pred_check_branch
      %45 = sbr.rel (0) target = $region17
    $region16: #{tpu_custom_call.1} parent=1 // pred_region
      %s47 = ssub.s32 1792, 1792
      %48 = vsyncadd [#allocation9], %s47
      %s49 = sshll.u32 [#allocation8], 4
      %s50 = int_to_ptr.vmem [resolvable:$true] %s49
      %55 = dma.hbm_to_vmem [thread:$0]  %s3, 1792, %s50, [#allocation9], 128, 128, 8
    $region17: #{tpu_custom_call.1} parent=1 // pred_fallthru
      _
    // Predicated region
    $region18: #{tpu_custom_call.1} parent=1 // pred_check
      _
    $region19: #{tpu_custom_call.1} parent=1 // pred_check_branch
      %57 = sbr.rel (0) target = $region21
    $region20: #{tpu_custom_call.1} parent=1 // pred_region
      _
    $region21: #{tpu_custom_call.1} parent=1 // pred_fallthru
      _
    // Predicated region
    $region22: #{tpu_custom_call.1} parent=1 // pred_check
      _
    $region23: #{tpu_custom_call.1} parent=1 // pred_check_branch
      %59 = sbr.rel (0) target = $region25
    $region24: #{tpu_custom_call.1} parent=1 // pred_region
      %60 = dma.done [#allocation3], 128
    $region25: #{tpu_custom_call.1} parent=1 // pred_fallthru
      _
    // Predicated region
    $region26: #{tpu_custom_call.1} parent=1 // pred_check
      _
    $region27: #{tpu_custom_call.1} parent=1 // pred_check_branch
      %62 = sbr.rel (0) target = $region29
    $region28: #{tpu_custom_call.1} parent=1 // pred_region
      %63 = dma.done [#allocation6], 128
    $region29: #{tpu_custom_call.1} parent=1 // pred_fallthru
      _
    // Predicated region
    $region30: #{tpu_custom_call.1} parent=1 // pred_check
      _
    $region31: #{tpu_custom_call.1} parent=1 // pred_check_branch
      %65 = sbr.rel (0) target = $region33
    $region32: #{tpu_custom_call.1} parent=1 // pred_region
      %66 = dma.done [#allocation6], 128
    $region33: #{tpu_custom_call.1} parent=1 // pred_fallthru
      _
    // Predicated region
    $region34: #{tpu_custom_call.1} parent=1 // pred_check
      _
    $region35: #{tpu_custom_call.1} parent=1 // pred_check_branch
      %68 = sbr.rel (0) target = $region37
    $region36: #{tpu_custom_call.1} parent=1 // pred_region
      %69 = dma.done [#allocation9], 1792
    $region37: #{tpu_custom_call.1} parent=1 // pred_fallthru
      _
    %v70 = vld [vmem:[#allocation2] sm:$0xff]
    %v71 = vld [vmem:[#allocation5] sm:$0xff]
    %v72 = vld [vmem:[#allocation7] sm:$0xff]
    %v73 = vld [vmem:[#allocation8] sm:$0xff]
    %v74 = vld [vmem:[#allocation8 + $0x8] sm:$0xff]
    %v75 = vld [vmem:[#allocation8 + $0x10] sm:$0xff]
    %v76 = vld [vmem:[#allocation8 + $0x18] sm:$0xff]
    %v77 = vld [vmem:[#allocation8 + $0x20] sm:$0xff]
    %v78 = vld [vmem:[#allocation8 + $0x28] sm:$0xff]
    %v79 = vld [vmem:[#allocation8 + $0x30] sm:$0xff]
    %v80 = vld [vmem:[#allocation8 + $0x38] sm:$0xff]
    %v81 = vld [vmem:[#allocation8 + $0x40] sm:$0xff]
    %v82 = vld [vmem:[#allocation8 + $0x48] sm:$0xff]
    %v83 = vld [vmem:[#allocation8 + $0x50] sm:$0xff]
    %v84 = vld [vmem:[#allocation8 + $0x58] sm:$0xff]
    %v85 = vld [vmem:[#allocation8 + $0x60] sm:$0xff]
    %v86 = vld [vmem:[#allocation8 + $0x68] sm:$0xff]
    %v87 = vld [vmem:[%s4] sm:$0x1]
    %v88 = vld [vmem:[%s4 + $0x1] sm:$0x1]
    %v89 = vld [vmem:[%s4 + $0x2] sm:$0x1]
    %v90 = vld [vmem:[%s4 + $0x3] sm:$0x1]
    %v91 = vld [vmem:[%s4 + $0x4] sm:$0x1]
    %93 = vrot.lane.b32.xlu0 %v71, 32
    %v94 = vpop.permute.xlu0 %93
    %vm96 = vcmask 261120
    %v97 = vsel %vm96, %v70, %v94
    %vm98 = vcmask 523264
    %v100 = vsel %vm98, %v97, 0
    %102 = vmatprep.subr.mxu0 0.0
    %103 = vmatpush1.msra.mxu0 %v73
    %104 = vmatprep.subr.mxu0 0.0
    %105 = vmatpush1.msra.mxu0 %v74
    %106 = vmatprep.subr.mxu0 0.0
    %107 = vmatpush1.msra.mxu0 %v75
    %108 = vmatprep.subr.mxu0 0.0
    %109 = vmatpush1.msra.mxu0 %v76
    %110 = vmatprep.subr.mxu0 0.0
    %111 = vmatpush1.msra.mxu0 %v77
    %112 = vmatprep.subr.mxu0 0.0
    %113 = vmatpush1.msra.mxu0 %v78
    %114 = vmatprep.subr.mxu0 0.0
    %115 = vmatpush1.msra.mxu0 %v79
    %116 = vmatprep.subr.mxu0 0.0
    %117 = vmatpush1.msra.mxu0 %v80
    %118 = vmatprep.subr.mxu0 0.0
    %119 = vmatpush1.msra.mxu0 0.0
    %120 = vmatprep.subr.mxu0 0.0
    %121 = vmatpush1.msra.mxu0 0.0
    %122 = vmatprep.subr.mxu0 0.0
    %123 = vmatpush1.msra.mxu0 0.0
    %124 = vmatprep.subr.mxu0 0.0
    %125 = vmatpush1.msra.mxu0 0.0
    %126 = vmatprep.subr.mxu0 0.0
    %127 = vmatpush1.msra.mxu0 0.0
    %128 = vmatprep.subr.mxu0 0.0
    %129 = vmatpush1.msra.mxu0 0.0
    %130 = vmatprep.subr.mxu0 0.0
    %131 = vmatpush1.msra.mxu0 0.0
    %132 = vmatprep.subr.mxu0 0.0
    %133 = vmatpush1.msra.mxu0 0.0
    %134 = vmatprep.subr.mxu0 0.0
    %135 = vmatpush1.msra.mxu0 0.0
    %136 = vmatprep.subr.mxu0 0.0
    %137 = vmatpush1.msra.mxu0 0.0
    %138 = vmatprep.subr.mxu0 0.0
    %139 = vmatpush1.msra.mxu0 0.0
    %140 = vmatprep.subr.mxu0 0.0
    %141 = vmatpush1.msra.mxu0 0.0
    %142 = vmatprep.subr.mxu0 0.0
    %143 = vmatpush1.msra.mxu0 0.0
    %144 = vmatprep.subr.mxu0 0.0
    %145 = vmatpush1.msra.mxu0 0.0
    %146 = vmatprep.subr.mxu0 0.0
    %147 = vmatpush1.msra.mxu0 0.0
    %148 = vmatprep.subr.mxu0 0.0
    %149 = vmatpush1.msra.mxu0 0.0
    %150 = vmatprep.subr.mxu0 0.0
    %151 = vmatpush1.msra.mxu0 0.0
    %152 = vmatprep.subr.mxu0 0.0
    %153 = vmatpush1.msra.mxu0 0.0
    %154 = vmatprep.subr.mxu0 0.0
    %155 = vmatpush1.msra.mxu0 0.0
    %156 = vmatprep.subr.mxu0 0.0
    %157 = vmatpush1.msra.mxu0 0.0
    %158 = vmatprep.subr.mxu0 0.0
    %159 = vmatpush1.msra.mxu0 0.0
    %160 = vmatprep.subr.mxu0 0.0
    %161 = vmatpush1.msra.mxu0 0.0
    %162 = vmatprep.subr.mxu0 0.0
    %163 = vmatpush1.msra.mxu0 0.0
    %164 = vmatprep.subr.mxu0 0.0
    %165 = vmatpush1.msra.mxu0 0.0
    %166 = vmatprep.mubr.f32.mxu0 0.0
    %167 = vmatmul.mubr.f32.gmra.mrb[0].mxu0 %v100
    %v168 = vpop.f32.mrb[0].mxu0
    %v169 = vadd.f32 0.0, %v168
    %v170 = vpop.f32.mrb[0].mxu0
    %171 = vdwg.mxu0
    %v172 = vlaneseq
    %v173 = vshrl.u32 %v172, 7
    %v174 = vsub.s32 0, %v173
    %v175 = vrot.slane %v87, %v174
    %v176 = vadd.f32 %v169, %v175
    %v177 = vmul.f32 %v176, %v71
    %v178 = vsel %vm96, %v177, 0.0
    %179 = vadd.xlane.f32.xlu0 %v178
    %v180 = vpop.xlane.xlu0 %179
    %v181 = vlaneseq
    %v182 = vshrl.u32 %v181, 7
    %v183 = vsub.s32 0, %v182
    %v184 = vrot.slane %v88, %v183
    %v185 = vmul.f32 %v180, %v184
    %187 = vrot.lane.b32.xlu0 %v185, 32
    %v188 = vpop.permute.xlu0 %187
    %v190 = vadd.f32 %v169, %v188
    %v191 = vlaneseq
    %v192 = vshrl.u32 %v191, 7
    %v193 = vsub.s32 0, %v192
    %v194 = vrot.slane %v89, %v193
    %196 = vrot.lane.b32.xlu0 %v194, 32
    %v197 = vpop.permute.xlu0 %196
    %v199 = vadd.f32 %v190, %v197
    %v200 = vmax.f32 %v199, 0.0
    %v201 = vlaneseq
    %v202 = vshrl.u32 %v201, 7
    %v203 = vsub.s32 0, %v202
    %v204 = vrot.slane %v90, %v203
    %206 = vrot.lane.b32.xlu0 %v200, 96
    %v207 = vpop.permute.xlu0 %206
    %v208 = vsel %vm96, %v207, 0
    %210 = vmatprep.subr.mxu0 0.0
    %211 = vmatpush1.msra.mxu0 %v81
    %212 = vmatprep.subr.mxu0 0.0
    %213 = vmatpush1.msra.mxu0 %v82
    %214 = vmatprep.subr.mxu0 0.0
    %215 = vmatpush1.msra.mxu0 %v83
    %216 = vmatprep.subr.mxu0 0.0
    %217 = vmatpush1.msra.mxu0 %v84
    %218 = vmatprep.subr.mxu0 0.0
    %219 = vmatpush1.msra.mxu0 0.0
    %220 = vmatprep.subr.mxu0 0.0
    %221 = vmatpush1.msra.mxu0 0.0
    %222 = vmatprep.subr.mxu0 0.0
    %223 = vmatpush1.msra.mxu0 0.0
    %224 = vmatprep.subr.mxu0 0.0
    %225 = vmatpush1.msra.mxu0 0.0
    %226 = vmatprep.subr.mxu0 0.0
    %227 = vmatpush1.msra.mxu0 0.0
    %228 = vmatprep.subr.mxu0 0.0
    %229 = vmatpush1.msra.mxu0 0.0
    %230 = vmatprep.subr.mxu0 0.0
    %231 = vmatpush1.msra.mxu0 0.0
    %232 = vmatprep.subr.mxu0 0.0
    %233 = vmatpush1.msra.mxu0 0.0
    %234 = vmatprep.subr.mxu0 0.0
    %235 = vmatpush1.msra.mxu0 0.0
    %236 = vmatprep.subr.mxu0 0.0
    %237 = vmatpush1.msra.mxu0 0.0
    %238 = vmatprep.subr.mxu0 0.0
    %239 = vmatpush1.msra.mxu0 0.0
    %240 = vmatprep.subr.mxu0 0.0
    %241 = vmatpush1.msra.mxu0 0.0
    %242 = vmatprep.subr.mxu0 0.0
    %243 = vmatpush1.msra.mxu0 0.0
    %244 = vmatprep.subr.mxu0 0.0
    %245 = vmatpush1.msra.mxu0 0.0
    %246 = vmatprep.subr.mxu0 0.0
    %247 = vmatpush1.msra.mxu0 0.0
    %248 = vmatprep.subr.mxu0 0.0
    %249 = vmatpush1.msra.mxu0 0.0
    %250 = vmatprep.subr.mxu0 0.0
    %251 = vmatpush1.msra.mxu0 0.0
    %252 = vmatprep.subr.mxu0 0.0
    %253 = vmatpush1.msra.mxu0 0.0
    %254 = vmatprep.subr.mxu0 0.0
    %255 = vmatpush1.msra.mxu0 0.0
    %256 = vmatprep.subr.mxu0 0.0
    %257 = vmatpush1.msra.mxu0 0.0
    %258 = vmatprep.subr.mxu0 0.0
    %259 = vmatpush1.msra.mxu0 0.0
    %260 = vmatprep.subr.mxu0 0.0
    %261 = vmatpush1.msra.mxu0 0.0
    %262 = vmatprep.subr.mxu0 0.0
    %263 = vmatpush1.msra.mxu0 0.0
    %264 = vmatprep.subr.mxu0 0.0
    %265 = vmatpush1.msra.mxu0 0.0
    %266 = vmatprep.subr.mxu0 0.0
    %267 = vmatpush1.msra.mxu0 0.0
    %268 = vmatprep.subr.mxu0 0.0
    %269 = vmatpush1.msra.mxu0 0.0
    %270 = vmatprep.subr.mxu0 0.0
    %271 = vmatpush1.msra.mxu0 0.0
    %272 = vmatprep.subr.mxu0 0.0
    %273 = vmatpush1.msra.mxu0 0.0
    %274 = vmatprep.mubr.f32.mxu0 0.0
    %275 = vmatmul.mubr.f32.gmra.mrb[0].mxu0 %v208
    %v276 = vpop.f32.mrb[0].mxu0
    %v277 = vadd.f32 %v204, %v276
    %v278 = vpop.f32.mrb[0].mxu0
    %279 = vdwg.mxu0
    %v280 = vmax.f32 %v277, 0.0
    %v281 = vlaneseq
    %v282 = vshrl.u32 %v281, 7
    %v283 = vsub.s32 0, %v282
    %v284 = vrot.slane %v91, %v283
    %vm285 = vcmask 130048
    %v287 = vsel %vm285, %v280, 0
    %289 = vmatprep.subr.mxu0 0.0
    %290 = vmatpush1.msra.mxu0 %v85
    %291 = vmatprep.subr.mxu0 0.0
    %292 = vmatpush1.msra.mxu0 %v86
    %293 = vmatprep.subr.mxu0 0.0
    %294 = vmatpush1.msra.mxu0 0.0
    %295 = vmatprep.subr.mxu0 0.0
    %296 = vmatpush1.msra.mxu0 0.0
    %297 = vmatprep.subr.mxu0 0.0
    %298 = vmatpush1.msra.mxu0 0.0
    %299 = vmatprep.subr.mxu0 0.0
    %300 = vmatpush1.msra.mxu0 0.0
    %301 = vmatprep.subr.mxu0 0.0
    %302 = vmatpush1.msra.mxu0 0.0
    %303 = vmatprep.subr.mxu0 0.0
    %304 = vmatpush1.msra.mxu0 0.0
    %305 = vmatprep.subr.mxu0 0.0
    %306 = vmatpush1.msra.mxu0 0.0
    %307 = vmatprep.subr.mxu0 0.0
    %308 = vmatpush1.msra.mxu0 0.0
    %309 = vmatprep.subr.mxu0 0.0
    %310 = vmatpush1.msra.mxu0 0.0
    %311 = vmatprep.subr.mxu0 0.0
    %312 = vmatpush1.msra.mxu0 0.0
    %313 = vmatprep.subr.mxu0 0.0
    %314 = vmatpush1.msra.mxu0 0.0
    %315 = vmatprep.subr.mxu0 0.0
    %316 = vmatpush1.msra.mxu0 0.0
    %317 = vmatprep.subr.mxu0 0.0
    %318 = vmatpush1.msra.mxu0 0.0
    %319 = vmatprep.subr.mxu0 0.0
    %320 = vmatpush1.msra.mxu0 0.0
    %321 = vmatprep.subr.mxu0 0.0
    %322 = vmatpush1.msra.mxu0 0.0
    %323 = vmatprep.subr.mxu0 0.0
    %324 = vmatpush1.msra.mxu0 0.0
    %325 = vmatprep.subr.mxu0 0.0
    %326 = vmatpush1.msra.mxu0 0.0
    %327 = vmatprep.subr.mxu0 0.0
    %328 = vmatpush1.msra.mxu0 0.0
    %329 = vmatprep.subr.mxu0 0.0
    %330 = vmatpush1.msra.mxu0 0.0
    %331 = vmatprep.subr.mxu0 0.0
    %332 = vmatpush1.msra.mxu0 0.0
    %333 = vmatprep.subr.mxu0 0.0
    %334 = vmatpush1.msra.mxu0 0.0
    %335 = vmatprep.subr.mxu0 0.0
    %336 = vmatpush1.msra.mxu0 0.0
    %337 = vmatprep.subr.mxu0 0.0
    %338 = vmatpush1.msra.mxu0 0.0
    %339 = vmatprep.subr.mxu0 0.0
    %340 = vmatpush1.msra.mxu0 0.0
    %341 = vmatprep.subr.mxu0 0.0
    %342 = vmatpush1.msra.mxu0 0.0
    %343 = vmatprep.subr.mxu0 0.0
    %344 = vmatpush1.msra.mxu0 0.0
    %345 = vmatprep.subr.mxu0 0.0
    %346 = vmatpush1.msra.mxu0 0.0
    %347 = vmatprep.subr.mxu0 0.0
    %348 = vmatpush1.msra.mxu0 0.0
    %349 = vmatprep.subr.mxu0 0.0
    %350 = vmatpush1.msra.mxu0 0.0
    %351 = vmatprep.subr.mxu0 0.0
    %352 = vmatpush1.msra.mxu0 0.0
    %353 = vmatprep.mubr.f32.mxu0 0.0
    %354 = vmatmul.mubr.f32.gmra.mrb[0].mxu0 %v287
    %v355 = vpop.f32.mrb[0].mxu0
    %v356 = vadd.f32 %v284, %v355
    %v357 = vpop.f32.mrb[0].mxu0
    %358 = vdwg.mxu0
    %v359 = vmul.f32 %v72, %v71
    %v360 = vsel %vm96, %v359, 0.0
    %361 = vadd.xlane.f32.xlu0 %v360
    %v362 = vpop.xlane.xlu0 %361
    %v363 = vlaneseq
    %v364 = vand.u32 %v363, 127
    %vm365 = vcmp.eq.s32.totalorder %v364, 2
    %v366 = vsel %vm365, 1, 0
    %v367 = vcvt.s32.f32 %v366
    %v368 = vmul.f32 %v362, %v367
    %v369 = vadd.f32 %v356, %v368
    %vm370 = vcmask 64512
    %371 = vst.msk [vmem:[#allocation10] sm:$0xff] %vm370, %v369
    // Predicated region
    $region38: #{tpu_custom_call.1} parent=1 // pred_check
      _
    $region39: #{tpu_custom_call.1} parent=1 // pred_check_branch
      %373 = sbr.rel (0) target = $region41
    $region40: #{tpu_custom_call.1} parent=1 // pred_region
      %s375 = ssub.s32 128, 128
      %376 = vsyncadd [#allocation4], %s375
      %s378 = sshll.u32 [#allocation10], 4
      %s379 = int_to_ptr.vmem [resolvable:$true] %s378
      %381 = dma.vmem_to_hbm [thread:$0]  %s379, 128, %s5, [#allocation4]
    $region41: #{tpu_custom_call.1} parent=1 // pred_fallthru
      _
    // Predicated region
    $region42: #{tpu_custom_call.1} parent=1 // pred_check
      _
    $region43: #{tpu_custom_call.1} parent=1 // pred_check_branch
      %383 = sbr.rel (0) target = $region45
    $region44: #{tpu_custom_call.1} parent=1 // pred_region
      %384 = dma.done [#allocation4], 128
    $region45: #{tpu_custom_call.1} parent=1 // pred_fallthru
      _
    %385 = vsyncpa [#allocation3], 1
    %386 = vsyncpa [#allocation6], 1
    %387 = vsyncpa [#allocation9], 1
    %388 = vsyncpa [#allocation4], 1

</llo_original>
